<compile_context>
chip_gen: v7x
topology: tpu7x:2x2x1
jax: 0.10.0
libtpu: 0.0.40
codegen_flags: <defaults>
</compile_context>

<pallas_src>
import functools

import jax
import jax.numpy as jnp
from jax.experimental import pallas as pl
from jax.experimental.pallas import tpu as pltpu


def noise_kernel(x_ref, noise_ref, o_ref, *, std):
    # x_ref / o_ref: (row_block, lane_block) lane-dense tile of the input.
    # noise_ref:     (1, lane_block) f32 noise row (broadcast over rows).
    # f32 accumulate, single rounding back to the output dtype.
    x = x_ref[...].astype(jnp.float32)
    o_ref[...] = (x + noise_ref[...] * std).astype(o_ref.dtype)


def _collapse_to_lane_dense(shape):
    """Collapse trailing dims into a lane-dense last axis.

    Returns (R, L) with R * L == prod(shape) and L a multiple of shape[-1].
    """
    L = shape[-1]
    i = len(shape) - 2
    while i >= 0 and (L % 128 != 0 or L < 256) and L * shape[i] <= 65536:
        L *= shape[i]
        i -= 1
    R = 1
    for d in shape[: i + 1]:
        R *= d
    return R, L


def _tpu_block_tuning():
    """(max_block_bytes, vmem_limit_bytes) tuned per TPU generation."""
    kind = ""
    try:
        kind = jax.devices()[0].device_kind.lower()
    except Exception:
        pass
    if "v5 lite" in kind or "v5e" in kind or "v5lite" in kind:
        # ~820 GB/s HBM: per-step overhead already <10% at 2 MiB; stay inside
        # the 16 MiB scoped-VMEM default (2 in + 2 out double buffers).
        return 2 * 1024 * 1024, None
    if "v6" in kind:
        # ~1.4 TB/s: 8 MiB blocks cut per-step overhead to ~3%; raise the
        # 32 MiB scoped default (128 MiB physical leaves plenty of headroom).
        return 8 * 1024 * 1024, 64 << 20
    if "v7" in kind or "tpu7" in kind or "7x" in kind:
        # ~3.2 TB/s per TC: 8 MiB blocks; 2in+2out buffers = 32 MiB, so raise
        # the 32 MiB scoped default while staying under 64 MiB physical VMEM.
        return 8 * 1024 * 1024, 48 << 20
    # Unknown part: conservative middle ground.
    return 4 * 1024 * 1024, 48 << 20


def noise_layer(x, noise, std=0.1, *, max_block_bytes=None, vmem_limit_bytes=None):
    """out = x + noise * std, with noise broadcast over all leading dims of x.

    x:     any-rank array (e.g. NCHW); x.shape[-1] == noise.shape[0]
    noise: 1-D float32 array of length x.shape[-1]
    """
    orig_shape = x.shape
    W = orig_shape[-1]
    assert noise.shape == (W,)

    auto_blk, auto_vmem = _tpu_block_tuning()
    if max_block_bytes is None:
        max_block_bytes = auto_blk
    if vmem_limit_bytes is None:
        vmem_limit_bytes = auto_vmem

    if x.ndim == 1:
        R, L = 1, W
    else:
        R, L = _collapse_to_lane_dense(orig_shape)

    x2 = x.reshape(R, L)

    # One (1, L) noise row covers the collapsed lane dim; broadcast semantics
    # are unchanged since the noise only depends on the last dim.
    noise_row = jnp.tile(noise.astype(jnp.float32), L // W).reshape(1, L)

    itemsize = jnp.dtype(x.dtype).itemsize
    # Sublane packing multiple: 8 (f32), 16 (bf16/f16), 32 (int8/fp8).
    sub_mult = max(8, 32 // itemsize)

    # Lane blocking only in the wide-L regime where even a minimal
    # sub_mult-row slab over the full lane dim exceeds the block budget.
    if L * sub_mult * itemsize <= max_block_bytes:
        lane_block = L
    else:
        lanes_cap = (max_block_bytes // (sub_mult * itemsize)) // 128 * 128
        lane_block = max(128, min(L, lanes_cap))

    rows_cap = (max_block_bytes // max(1, lane_block * itemsize)) // sub_mult * sub_mult
    rows_cap = max(sub_mult, rows_cap)
    row_block = min(R, rows_cap)

    num_lane_blocks = pl.cdiv(L, lane_block)
    num_row_blocks = pl.cdiv(R, row_block)

    # Prefer >=2 grid steps for non-trivial inputs so both TensorCores on
    # megacore parts (v7x) get DMA work; costs nothing elsewhere.
    if (num_row_blocks * num_lane_blocks == 1
            and R * L * itemsize > (1 << 20)
            and R > sub_mult):
        half = pl.cdiv(R, 2)
        row_block = max(sub_mult, pl.cdiv(half, sub_mult) * sub_mult)
        num_row_blocks = pl.cdiv(R, row_block)

    # Lane blocks outer, row blocks inner: the noise block index only changes
    # on the outer axis, so it is not re-fetched across the inner loop.
    grid = (num_lane_blocks, num_row_blocks)

    out = pl.pallas_call(
        functools.partial(noise_kernel, std=float(std)),
        out_shape=jax.ShapeDtypeStruct((R, L), x.dtype),
        grid=grid,
        in_specs=[
            pl.BlockSpec((row_block, lane_block), lambda j, i: (i, j)),
            pl.BlockSpec((1, lane_block), lambda j, i: (0, j)),
        ],
        out_specs=pl.BlockSpec((row_block, lane_block), lambda j, i: (i, j)),
        # Output aliases the (reshaped) input: true in-place when the caller
        # donates x under jit; otherwise XLA copies and it is a no-op.
        input_output_aliases={0: 0},
        compiler_params=pltpu.CompilerParams(
            dimension_semantics=("parallel", "parallel"),
            vmem_limit_bytes=vmem_limit_bytes,
        ),
    )(x2, noise_row)

    return out.reshape(orig_shape)


if __name__ == "__main__":
    std = 0.1
    key = jax.random.PRNGKey(0)
    kx, kn = jax.random.split(key)

    # Small NCHW input, consistent with a CIFAR-style conv pipeline.
    x = jax.random.normal(kx, (2, 4, 16, 16), dtype=jnp.float32)
    # torch.randn(x.shape[-1]) equivalent — drawn host-side, deterministic.
    # TODO(synk): the PyTorch module samples fresh CUDA randn each forward;
    # here the noise vector is passed in explicitly (same math, explicit RNG).
    noise = jax.random.normal(kn, (x.shape[-1],), dtype=jnp.float32)

    out = noise_layer(x, noise, std=std)
    out = jax.block_until_ready(out)

    # Reference check in plain JAX (same semantics as the PyTorch module).
    ref = x + noise * std
    assert out.shape == x.shape and out.dtype == x.dtype
    assert jnp.allclose(out, ref, atol=1e-6), "mismatch vs reference"

    print("KERNEL_OK")
</pallas_src>

<mosaic_0001>
module attributes {stable_mosaic.version = 11 : i64} {
  func.func @noise_kernel(%arg0: i32, %arg1: i32, %arg2: memref<8x256xf32, #tpu.memory_space<vmem>>, %arg3: memref<1x256xf32, #tpu.memory_space<vmem>>, %arg4: memref<8x256xf32, #tpu.memory_space<vmem>>) attributes {dimension_semantics = [#tpu.dimension_semantics<parallel>, #tpu.dimension_semantics<parallel>], iteration_bounds = array<i64: 1, 1>, scalar_prefetch = 0 : i64, scratch_operands = 0 : i64, tpu.core_type = #tpu.core_type<tc>, window_params = [{transform_indices = @transform_0, window_bounds = array<i64: 8, 256>}, {transform_indices = @transform_1, window_bounds = array<i64: 1, 256>}, {transform_indices = @transform_2, window_bounds = array<i64: 8, 256>}]} {
    %c0 = arith.constant 0 : index
    %c0_0 = arith.constant 0 : index
    %0 = vector.load %arg2[%c0, %c0_0] : memref<8x256xf32, #tpu.memory_space<vmem>>, vector<8x256xf32>
    %c0_1 = arith.constant 0 : index
    %c0_2 = arith.constant 0 : index
    %1 = vector.load %arg3[%c0_1, %c0_2] : memref<1x256xf32, #tpu.memory_space<vmem>>, vector<1x256xf32>
    %cst = arith.constant 1.000000e-01 : f32
    %2 = vector.broadcast %cst : f32 to vector<1x256xf32>
    %3 = arith.mulf %1, %2 : vector<1x256xf32>
    %4 = vector.broadcast %3 : vector<1x256xf32> to vector<8x256xf32>
    %5 = arith.addf %0, %4 : vector<8x256xf32>
    %c0_3 = arith.constant 0 : index
    %c0_4 = arith.constant 0 : index
    %6 = vector.load %arg4[%c0_3, %c0_4] : memref<8x256xf32, #tpu.memory_space<vmem>>, vector<8x256xf32>
    tpu.vector_store %arg4[%c0_3, %c0_4], %5 {strides = array<i32>} : memref<8x256xf32, #tpu.memory_space<vmem>>, vector<8x256xf32>,
    return
  }
  func.func @transform_0(%arg0: i32, %arg1: i32) -> (i32, i32) {
    %c0_i32 = arith.constant 0 : i32
    return %arg1, %arg0 : i32, i32
  }
  func.func @transform_1(%arg0: i32, %arg1: i32) -> (i32, i32) {
    %c0_i32 = arith.constant 0 : i32
    %c0_i32_0 = arith.constant 0 : i32
    return %c0_i32, %arg0 : i32, i32
  }
  func.func @transform_2(%arg0: i32, %arg1: i32) -> (i32, i32) {
    %c0_i32 = arith.constant 0 : i32
    return %arg1, %arg0 : i32, i32
  }
}

</mosaic_0001>

<llo_original>
// kernel: tpu_custom_call.1
$region0: #{tpu_custom_call.1}
  #allocation0 [shape = 'u32[]', space=smem, size = 0x4, offset = 0x4, fixed_abs, tag = 'smem constant byte address 0x4 - core index']
  #allocation1 [shape = 'u32[144,128]{1,0:T(1,128)}', space=vmem, size = 0x12000, scoped, tag = 'internal scratch']
  %s0 = inlined_call_operand.hbm [shape: f32[8,256], index: 0, kind: input, shape index: {}, may-alias: {0,2}]
  %s1 = inlined_call_operand.vmem [shape: f32[1,256], index: 1, kind: input, shape index: {}]
  %s2 = inlined_call_operand.hbm [shape: f32[8,256], index: 2, kind: output, shape index: {}, may-alias: {0,2}]
  %s3 = sld [smem:[#allocation0]]
  $region22: #{tpu_custom_call.1} parent=0
    _
  %s5 = ssub.s32 1, %s3
  %s6 = scalar_select 0, %s5, %s3
  $region1: #{tpu_custom_call.1} parent=0
    #allocation2 [shape = 'u8[8192]{0}', space=vmem, size = 0x2000, scoped, tag = 'input window, operand 0, single buffered']
    #allocation3 [shape = 's32[1]{0}', space=sflag, size = 0x4, scoped, tag = 'scoped memory for tpu_custom_call.1']
    #allocation4 [shape = 's32[1]{0}', space=sflag, size = 0x4, scoped, tag = 'scoped memory for tpu_custom_call.1']
    #allocation5 [shape = 'u8[8192]{0}', space=vmem, size = 0x2000, scoped, tag = 'output window, operand 0, single buffered']
    %7 = vsyncpa [#allocation3], 0
    %8 = vsyncpa [#allocation4], 0
    // Predicated region
    $region2: #{tpu_custom_call.1} parent=1 // pred_check
      _
    $region3: #{tpu_custom_call.1} parent=1 // pred_check_branch
      %10 = sbr.rel (0) target = $region5
    $region4: #{tpu_custom_call.1} parent=1 // pred_region
      %s12 = ssub.s32 256, 256
      %13 = vsyncadd [#allocation3], %s12
      %s15 = sshll.u32 [#allocation2], 4
      %s16 = int_to_ptr.vmem [resolvable:$true] %s15
      %18 = dma.hbm_to_vmem [thread:$0]  %s0, 256, %s16, [#allocation3]
    $region5: #{tpu_custom_call.1} parent=1 // pred_fallthru
      _
    // Predicated region
    $region6: #{tpu_custom_call.1} parent=1 // pred_check
      _
    $region7: #{tpu_custom_call.1} parent=1 // pred_check_branch
      %20 = sbr.rel (0) target = $region9
    $region8: #{tpu_custom_call.1} parent=1 // pred_region
      _
    $region9: #{tpu_custom_call.1} parent=1 // pred_fallthru
      _
    // Predicated region
    $region10: #{tpu_custom_call.1} parent=1 // pred_check
      _
    $region11: #{tpu_custom_call.1} parent=1 // pred_check_branch
      %22 = sbr.rel (0) target = $region13
    $region12: #{tpu_custom_call.1} parent=1 // pred_region
      %23 = dma.done [#allocation3], 256
    $region13: #{tpu_custom_call.1} parent=1 // pred_fallthru
      _
    %v24 = vld [vmem:[#allocation2] sm:$0xff]
    %v25 = vld [vmem:[#allocation2 + $0x8] sm:$0xff]
    %v26 = vld [vmem:[%s1] sm:$0x3]
    %v27 = vmul.f32 %v26, 0.1
    %v29 = vlaneseq
    %v30 = vshrl.u32 %v29, 7
    %v31 = vsub.s32 0, %v30
    %v32 = vrot.slane %v27, %v31
    %v33 = vlaneseq
    %v34 = vshrl.u32 %v33, 7
    %v35 = vsub.s32 1, %v34
    %v36 = vrot.slane %v27, %v35
    %v39 = vadd.f32 %v24, %v32
    %v40 = vadd.f32 %v25, %v36
    %41 = vst [vmem:[#allocation5] sm:$0xff] %v39
    %42 = vst [vmem:[#allocation5 + $0x8] sm:$0xff] %v40
    // Predicated region
    $region14: #{tpu_custom_call.1} parent=1 // pred_check
      _
    $region15: #{tpu_custom_call.1} parent=1 // pred_check_branch
      %44 = sbr.rel (0) target = $region17
    $region16: #{tpu_custom_call.1} parent=1 // pred_region
      %s46 = ssub.s32 256, 256
      %47 = vsyncadd [#allocation4], %s46
      %s49 = sshll.u32 [#allocation5], 4
      %s50 = int_to_ptr.vmem [resolvable:$true] %s49
      %52 = dma.vmem_to_hbm [thread:$0]  %s50, 256, %s2, [#allocation4]
    $region17: #{tpu_custom_call.1} parent=1 // pred_fallthru
      _
    // Predicated region
    $region18: #{tpu_custom_call.1} parent=1 // pred_check
      _
    $region19: #{tpu_custom_call.1} parent=1 // pred_check_branch
      %54 = sbr.rel (0) target = $region21
    $region20: #{tpu_custom_call.1} parent=1 // pred_region
      %55 = dma.done [#allocation4], 256
    $region21: #{tpu_custom_call.1} parent=1 // pred_fallthru
      _
    %56 = vsyncpa [#allocation3], 1
    %57 = vsyncpa [#allocation4], 1

</llo_original>
